<compile_context>
chip_gen: v7x
topology: tpu7x:2x2x1
jax: 0.10.0
libtpu: 0.0.40
codegen_flags: <defaults>
</compile_context>

<pallas_src>
import math

import jax
import jax.numpy as jnp
from jax.experimental import pallas as pl
from jax.experimental.pallas import tpu as pltpu

_LANE = 128
_SUBLANE = 8


def _add_kernel(a_ref, b_ref, o_ref):
    o_ref[...] = a_ref[...] + b_ref[...]


def _choose_2d_layout(total):
    """Pick (rows, cols, grid) with cols % 128 == 0, rows % (8 * grid) == 0.

    Prefers a small grid (2 blocks) for DMA/compute overlap and the widest
    (lane-dense) cols that still give an evenly-splittable, sublane-aligned
    row count. Returns None if no aligned factorization exists.
    """
    for grid in (2, 4, 1):
        # Walk cols from widest to narrowest multiples of 128 that divide total.
        for k in range(total // _LANE, 0, -1):
            cols = _LANE * k
            if total % cols:
                continue
            rows = total // cols
            if rows % (_SUBLANE * grid):
                continue
            return rows, cols, grid
    return None


def elementwise_add(x272, x286):
    assert x272.shape == x286.shape and x272.dtype == x286.dtype
    orig_shape = x272.shape
    total = math.prod(orig_shape)

    layout = _choose_2d_layout(total)
    if layout is None:
        # Fallback: single full-array block (legal because block == full array dims).
        cols = orig_shape[-1]
        rows = total // cols
        grid = 1
    else:
        rows, cols, grid = layout

    block_rows = rows // grid

    a2d = x272.reshape(rows, cols)
    b2d = x286.reshape(rows, cols)

    out2d = pl.pallas_call(
        _add_kernel,
        out_shape=jax.ShapeDtypeStruct((rows, cols), x272.dtype),
        grid=(grid,),
        in_specs=[
            pl.BlockSpec((block_rows, cols), lambda i: (i, 0)),
            pl.BlockSpec((block_rows, cols), lambda i: (i, 0)),
        ],
        out_specs=pl.BlockSpec((block_rows, cols), lambda i: (i, 0)),
        # Residual update: x272 is not reused afterward, so alias it to the output.
        input_output_aliases={0: 0},
        compiler_params=pltpu.CompilerParams(
            dimension_semantics=("parallel",),
        ),
    )(a2d, b2d)

    return out2d.reshape(orig_shape)


if __name__ == "__main__":
    key = jax.random.PRNGKey(0)
    k1, k2 = jax.random.split(key)
    # Shapes consistent with the module's forward: [1, 14, 14, 512]
    x272 = jax.random.normal(k1, (1, 14, 14, 512), dtype=jnp.float32)
    x286 = jax.random.normal(k2, (1, 14, 14, 512), dtype=jnp.float32)

    out = elementwise_add(x272, x286)
    out = jax.block_until_ready(out)

    # Correctness check against plain JAX reference.
    ref = x272 + x286
    assert out.shape == ref.shape
    assert jnp.allclose(out, ref, atol=1e-6, rtol=1e-6)

    print("KERNEL_OK")
</pallas_src>

<mosaic_0001>
module attributes {stable_mosaic.version = 11 : i64} {
  func.func @_add_kernel(%arg0: i32, %arg1: memref<8x6272xf32, #tpu.memory_space<vmem>>, %arg2: memref<8x6272xf32, #tpu.memory_space<vmem>>, %arg3: memref<8x6272xf32, #tpu.memory_space<vmem>>) attributes {dimension_semantics = [#tpu.dimension_semantics<parallel>], iteration_bounds = array<i64: 2>, scalar_prefetch = 0 : i64, scratch_operands = 0 : i64, tpu.core_type = #tpu.core_type<tc>, window_params = [{transform_indices = @transform_0, window_bounds = array<i64: 8, 6272>}, {transform_indices = @transform_1, window_bounds = array<i64: 8, 6272>}, {transform_indices = @transform_2, window_bounds = array<i64: 8, 6272>}]} {
    %c0 = arith.constant 0 : index
    %c0_0 = arith.constant 0 : index
    %0 = vector.load %arg1[%c0, %c0_0] : memref<8x6272xf32, #tpu.memory_space<vmem>>, vector<8x6272xf32>
    %c0_1 = arith.constant 0 : index
    %c0_2 = arith.constant 0 : index
    %1 = vector.load %arg2[%c0_1, %c0_2] : memref<8x6272xf32, #tpu.memory_space<vmem>>, vector<8x6272xf32>
    %2 = arith.addf %0, %1 : vector<8x6272xf32>
    %c0_3 = arith.constant 0 : index
    %c0_4 = arith.constant 0 : index
    %3 = vector.load %arg3[%c0_3, %c0_4] : memref<8x6272xf32, #tpu.memory_space<vmem>>, vector<8x6272xf32>
    tpu.vector_store %arg3[%c0_3, %c0_4], %2 {strides = array<i32>} : memref<8x6272xf32, #tpu.memory_space<vmem>>, vector<8x6272xf32>,
    return
  }
  func.func @transform_0(%arg0: i32) -> (i32, i32) {
    %c0_i32 = arith.constant 0 : i32
    %c0_i32_0 = arith.constant 0 : i32
    return %arg0, %c0_i32 : i32, i32
  }
  func.func @transform_1(%arg0: i32) -> (i32, i32) {
    %c0_i32 = arith.constant 0 : i32
    %c0_i32_0 = arith.constant 0 : i32
    return %arg0, %c0_i32 : i32, i32
  }
  func.func @transform_2(%arg0: i32) -> (i32, i32) {
    %c0_i32 = arith.constant 0 : i32
    %c0_i32_0 = arith.constant 0 : i32
    return %arg0, %c0_i32 : i32, i32
  }
}

</mosaic_0001>

<llo_original>
// kernel: tpu_custom_call.1
$region0: #{tpu_custom_call.1}
  #allocation0 [shape = 'u32[]', space=smem, size = 0x4, offset = 0x4, fixed_abs, tag = 'smem constant byte address 0x4 - core index']
  #allocation1 [shape = 'u32[144,128]{1,0:T(1,128)}', space=vmem, size = 0x12000, scoped, tag = 'internal scratch']
  %s0 = inlined_call_operand.hbm [shape: f32[16,6272], index: 0, kind: input, shape index: {}, may-alias: {0,2}]
  %s1 = inlined_call_operand.vmem [shape: f32[16,6272], index: 1, kind: input, shape index: {}]
  %s2 = inlined_call_operand.hbm [shape: f32[16,6272], index: 2, kind: output, shape index: {}, may-alias: {0,2}]
  %s3 = sld [smem:[#allocation0]]
  $region45: #{tpu_custom_call.1} parent=0
    _
  %s5 = ssub.s32 1, %s3
  %s6 = scalar_select 0, %s5, %s3
  $region1: #{tpu_custom_call.1} parent=0
    #allocation2 [shape = 'u8[401408]{0}', space=vmem, size = 0x62000, scoped, tag = 'input window, operand 0']
    #allocation3 [shape = 's32[2]{0}', space=sflag, size = 0x8, scoped, tag = 'scoped memory for tpu_custom_call.1']
    #allocation4 [shape = 's32[2]{0}', space=sflag, size = 0x8, scoped, tag = 'scoped memory for tpu_custom_call.1']
    #allocation5 [shape = 'u8[401408]{0}', space=vmem, size = 0x62000, scoped, tag = 'output window, operand 0']
    %7 = vsyncpa [#allocation3], 0
    %s8 = scalar_lea.sflag [#allocation3], 1
    %9 = vsyncpa %s8, 0
    %10 = vsyncpa [#allocation4], 0
    %s11 = scalar_lea.sflag [#allocation4], 1
    %12 = vsyncpa %s11, 0
    loop: start=0, step=1, limit=4
    $region2: #{tpu_custom_call.1} parent=1 // loop_pre_header
      _
    $region3: #{tpu_custom_call.1} parent=1 // loop_header
      %s14 = sphi 0, %s18
      %p15 = scmp.ge.s32.totalorder %s14, 4
      %s24 = sphi 0, %s26
      %s27 = sphi 0, %s24
      %s28 = sphi 0, %s27
      %s44 = sphi 0, %s28
      %s50 = sphi 0, %s52
      %s53 = sphi 0, %s50
      %s54 = sphi 0, %s53
      %s70 = sphi 0, %s54
      %s76 = sphi 0, %s78
      %s79 = sphi 0, %s76
      %s80 = sphi 0, %s79
      %s96 = sphi 0, %s80
    $region4: #{tpu_custom_call.1} parent=1 // loop_header_branch
      %17 = sbr.rel (%p15) target = $region8
    $region5: #{tpu_custom_call.1} parent=1 // loop_body
      %s19 = ssub.s32 %s14, 1
      %s20 = ssub.s32 %s14, 2
      %s21 = sadd.s32 %s14, 1
      %s22 = ssub.s32 %s14, %s21
      %p23 = scmp.eq.s32.totalorder %s22, 0
      %s25 = sadd.s32 %s24, 1
      %s26 = scalar_select %p23, %s24, %s25
      %p29 = pneg %p23
      %p30 = scmp.eq.s32.totalorder %s14, 1
      %p31 = por %p29, %p30
      %p32 = scmp.ne.s32.totalorder %s24, %s27
      %p33 = scmp.eq.s32.totalorder %s14, 0
      %p34 = por %p32, %p33
      %p35 = scmp.ne.s32.totalorder %s24, %s27
      %p36 = scmp.eq.s32.totalorder %s19, 1
      %p37 = por %p35, %p36
      %p38 = scmp.ne.s32.totalorder %s27, %s28
      %p39 = scmp.eq.s32.totalorder %s19, 0
      %p40 = por %p38, %p39
      %p41 = scmp.ne.s32.totalorder %s27, %s28
      %p42 = scmp.eq.s32.totalorder %s20, 1
      %p43 = por %p41, %p42
      %p45 = scmp.ne.s32.totalorder %s28, %s44
      %p46 = scmp.eq.s32.totalorder %s20, 0
      %p47 = por %p45, %p46
      %s48 = ssub.s32 %s14, %s21
      %p49 = scmp.eq.s32.totalorder %s48, 0
      %s51 = sadd.s32 %s50, 1
      %s52 = scalar_select %p49, %s50, %s51
      %p55 = pneg %p49
      %p56 = scmp.eq.s32.totalorder %s14, 1
      %p57 = por %p55, %p56
      %p58 = scmp.ne.s32.totalorder %s50, %s53
      %p59 = scmp.eq.s32.totalorder %s14, 0
      %p60 = por %p58, %p59
      %p61 = scmp.ne.s32.totalorder %s50, %s53
      %p62 = scmp.eq.s32.totalorder %s19, 1
      %p63 = por %p61, %p62
      %p64 = scmp.ne.s32.totalorder %s53, %s54
      %p65 = scmp.eq.s32.totalorder %s19, 0
      %p66 = por %p64, %p65
      %p67 = scmp.ne.s32.totalorder %s53, %s54
      %p68 = scmp.eq.s32.totalorder %s20, 1
      %p69 = por %p67, %p68
      %p71 = scmp.ne.s32.totalorder %s54, %s70
      %p72 = scmp.eq.s32.totalorder %s20, 0
      %p73 = por %p71, %p72
      %s74 = ssub.s32 %s14, %s21
      %p75 = scmp.eq.s32.totalorder %s74, 0
      %s77 = sadd.s32 %s76, 1
      %s78 = scalar_select %p75, %s76, %s77
      %p81 = pneg %p75
      %p82 = scmp.eq.s32.totalorder %s14, 1
      %p83 = por %p81, %p82
      %p84 = scmp.ne.s32.totalorder %s76, %s79
      %p85 = scmp.eq.s32.totalorder %s14, 0
      %p86 = por %p84, %p85
      %p87 = scmp.ne.s32.totalorder %s76, %s79
      %p88 = scmp.eq.s32.totalorder %s19, 1
      %p89 = por %p87, %p88
      %p90 = scmp.ne.s32.totalorder %s79, %s80
      %p91 = scmp.eq.s32.totalorder %s19, 0
      %p92 = por %p90, %p91
      %p93 = scmp.ne.s32.totalorder %s79, %s80
      %p94 = scmp.eq.s32.totalorder %s20, 1
      %p95 = por %p93, %p94
      %p97 = scmp.ne.s32.totalorder %s80, %s96
      %p98 = scmp.eq.s32.totalorder %s20, 0
      %p99 = por %p97, %p98
      %p100 = scmp.le.s32.totalorder 1, %s14
      %p101 = scmp.lt.s32.totalorder %s14, 3
      %p102 = pnand %p100, %p101
      %p103 = pneg %p102
      // Predicated region
      $region9: #{tpu_custom_call.1} parent=5 // pred_check
        _
      $region10: #{tpu_custom_call.1} parent=5 // pred_check_branch
        %105 = sbr.rel (%p102) target = $region12
      $region11: #{tpu_custom_call.1} parent=5 // pred_region
        %s106 = ssub.s32 %s14, 1
      $region12: #{tpu_custom_call.1} parent=5 // pred_fallthru
        _
      %p107 = scmp.lt.s32.totalorder %s14, 2
      // Predicated region
      $region13: #{tpu_custom_call.1} parent=5 // pred_check
        %p108 = pneg %p107
      $region14: #{tpu_custom_call.1} parent=5 // pred_check_branch
        %110 = sbr.rel (%p108) target = $region16
      $region15: #{tpu_custom_call.1} parent=5 // pred_region
        // Predicated region
        $region17: #{tpu_custom_call.1} parent=15 // pred_check
          %p111 = pneg %p34
        $region18: #{tpu_custom_call.1} parent=15 // pred_check_branch
          %113 = sbr.rel (%p111) target = $region20
        $region19: #{tpu_custom_call.1} parent=15 // pred_region
          %s114 = sand.u32 %s24, 1
          %s115 = scalar_lea.sflag [#allocation3], %s114
          %s116 = sand.u32 %s24, 1
          %s117 = smul.addr %s116, 392
          %s118 = scalar_lea.vmem [#allocation2], %s117
          %s120 = ssub.s32 6272, 6272
          %121 = vsyncadd %s115, %s120
          %s122 = smul.addr %s14, 49
          %s123 = smul.addr %s122, 128
          %s124 = scalar_lea.hbm %s0, %s123
          %s126 = sshll.u32 %s118, 4
          %s127 = int_to_ptr.vmem [resolvable:$true] %s126
          %129 = dma.hbm_to_vmem [thread:$0]  %s124, 6272, %s127, %s115
        $region20: #{tpu_custom_call.1} parent=15 // pred_fallthru
          _
        // Predicated region
        $region21: #{tpu_custom_call.1} parent=15 // pred_check
          %p130 = pneg %p60
        $region22: #{tpu_custom_call.1} parent=15 // pred_check_branch
          %132 = sbr.rel (%p130) target = $region24
        $region23: #{tpu_custom_call.1} parent=15 // pred_region
          %p133 = scmp.lt.s32.totalorder %s14, 1
          %s134 = scalar_select %p133, %s14, 1
          %s135 = smul.addr %s134, 49
          %s136 = smul.addr %s135, 8
          %s137 = scalar_lea.vmem %s1, %s136
        $region24: #{tpu_custom_call.1} parent=15 // pred_fallthru
          _
      $region16: #{tpu_custom_call.1} parent=5 // pred_fallthru
        _
      %p138 = scmp.le.s32.totalorder 1, %s14
      %p139 = scmp.lt.s32.totalorder %s14, 3
      %p140 = pnand %p138, %p139
      %p141 = pneg %p140
      // Predicated region
      $region25: #{tpu_custom_call.1} parent=5 // pred_check
        _
      $region26: #{tpu_custom_call.1} parent=5 // pred_check_branch
        %143 = sbr.rel (%p140) target = $region28
      $region27: #{tpu_custom_call.1} parent=5 // pred_region
        %s144 = ssub.s32 %s14, 1
        %s145 = sand.u32 %s27, 1
        %s146 = scalar_lea.sflag [#allocation3], %s145
        %s147 = sand.u32 %s27, 1
        %s148 = smul.addr %s147, 392
        %s149 = scalar_lea.vmem [#allocation2], %s148
        // Predicated region
        $region29: #{tpu_custom_call.1} parent=27 // pred_check
          %p150 = pneg %p40
        $region30: #{tpu_custom_call.1} parent=27 // pred_check_branch
          %152 = sbr.rel (%p150) target = $region32
        $region31: #{tpu_custom_call.1} parent=27 // pred_region
          %153 = dma.done %s146, 6272
        $region32: #{tpu_custom_call.1} parent=27 // pred_fallthru
          _
        %s154 = sand.u32 %s27, 1
        %s155 = scalar_lea.sflag [#allocation3], %s154
        %s156 = sand.u32 %s27, 1
        %s157 = smul.addr %s156, 392
        %s158 = scalar_lea.vmem [#allocation2], %s157
        %p159 = pneg %p40
        %p160 = pneg %p37
        %p161 = scmp.lt.s32.totalorder %s19, 1
        %s162 = scalar_select %p161, %s19, 1
        %s163 = smul.addr %s162, 49
        %s164 = smul.addr %s163, 8
        %s165 = scalar_lea.vmem %s1, %s164
        %p166 = pneg %p66
        %p167 = pneg %p63
        %p168 = pneg %p92
        %p169 = pneg %p89
        %s170 = sand.u32 %s79, 1
        %s171 = scalar_lea.sflag [#allocation4], %s170
        %s172 = sand.u32 %s79, 1
        %s173 = smul.addr %s172, 392
        %s174 = scalar_lea.vmem [#allocation5], %s173
        %p175 = scmp.lt.s32.totalorder %s19, 1
        %s176 = scalar_select %p175, %s19, 1
        %s177 = smul.addr %s176, 49
        %s178 = smul.addr %s177, 8
        %s179 = scalar_lea.vmem %s1, %s178
        %v180 = vld [vmem:[%s149] sm:$0xff]
        %v181 = vld [vmem:[%s149 + $0x8] sm:$0xff]
        %v182 = vld [vmem:[%s149 + $0x10] sm:$0xff]
        %v183 = vld [vmem:[%s149 + $0x18] sm:$0xff]
        %v184 = vld [vmem:[%s149 + $0x20] sm:$0xff]
        %v185 = vld [vmem:[%s149 + $0x28] sm:$0xff]
        %v186 = vld [vmem:[%s149 + $0x30] sm:$0xff]
        %v187 = vld [vmem:[%s149 + $0x38] sm:$0xff]
        %v188 = vld [vmem:[%s149 + $0x40] sm:$0xff]
        %v189 = vld [vmem:[%s149 + $0x48] sm:$0xff]
        %v190 = vld [vmem:[%s149 + $0x50] sm:$0xff]
        %v191 = vld [vmem:[%s149 + $0x58] sm:$0xff]
        %v192 = vld [vmem:[%s149 + $0x60] sm:$0xff]
        %v193 = vld [vmem:[%s149 + $0x68] sm:$0xff]
        %v194 = vld [vmem:[%s149 + $0x70] sm:$0xff]
        %v195 = vld [vmem:[%s149 + $0x78] sm:$0xff]
        %v196 = vld [vmem:[%s149 + $0x80] sm:$0xff]
        %v197 = vld [vmem:[%s149 + $0x88] sm:$0xff]
        %v198 = vld [vmem:[%s149 + $0x90] sm:$0xff]
        %v199 = vld [vmem:[%s149 + $0x98] sm:$0xff]
        %v200 = vld [vmem:[%s149 + $0xa0] sm:$0xff]
        %v201 = vld [vmem:[%s149 + $0xa8] sm:$0xff]
        %v202 = vld [vmem:[%s149 + $0xb0] sm:$0xff]
        %v203 = vld [vmem:[%s149 + $0xb8] sm:$0xff]
        %v204 = vld [vmem:[%s149 + $0xc0] sm:$0xff]
        %v205 = vld [vmem:[%s149 + $0xc8] sm:$0xff]
        %v206 = vld [vmem:[%s149 + $0xd0] sm:$0xff]
        %v207 = vld [vmem:[%s149 + $0xd8] sm:$0xff]
        %v208 = vld [vmem:[%s149 + $0xe0] sm:$0xff]
        %v209 = vld [vmem:[%s149 + $0xe8] sm:$0xff]
        %v210 = vld [vmem:[%s149 + $0xf0] sm:$0xff]
        %v211 = vld [vmem:[%s149 + $0xf8] sm:$0xff]
        %v212 = vld [vmem:[%s149 + $0x100] sm:$0xff]
        %v213 = vld [vmem:[%s149 + $0x108] sm:$0xff]
        %v214 = vld [vmem:[%s149 + $0x110] sm:$0xff]
        %v215 = vld [vmem:[%s149 + $0x118] sm:$0xff]
        %v216 = vld [vmem:[%s149 + $0x120] sm:$0xff]
        %v217 = vld [vmem:[%s149 + $0x128] sm:$0xff]
        %v218 = vld [vmem:[%s149 + $0x130] sm:$0xff]
        %v219 = vld [vmem:[%s149 + $0x138] sm:$0xff]
        %v220 = vld [vmem:[%s149 + $0x140] sm:$0xff]
        %v221 = vld [vmem:[%s149 + $0x148] sm:$0xff]
        %v222 = vld [vmem:[%s149 + $0x150] sm:$0xff]
        %v223 = vld [vmem:[%s149 + $0x158] sm:$0xff]
        %v224 = vld [vmem:[%s149 + $0x160] sm:$0xff]
        %v225 = vld [vmem:[%s149 + $0x168] sm:$0xff]
        %v226 = vld [vmem:[%s149 + $0x170] sm:$0xff]
        %v227 = vld [vmem:[%s149 + $0x178] sm:$0xff]
        %v228 = vld [vmem:[%s149 + $0x180] sm:$0xff]
        %v229 = vld [vmem:[%s179] sm:$0xff]
        %v230 = vld [vmem:[%s179 + $0x8] sm:$0xff]
        %v231 = vld [vmem:[%s179 + $0x10] sm:$0xff]
        %v232 = vld [vmem:[%s179 + $0x18] sm:$0xff]
        %v233 = vld [vmem:[%s179 + $0x20] sm:$0xff]
        %v234 = vld [vmem:[%s179 + $0x28] sm:$0xff]
        %v235 = vld [vmem:[%s179 + $0x30] sm:$0xff]
        %v236 = vld [vmem:[%s179 + $0x38] sm:$0xff]
        %v237 = vld [vmem:[%s179 + $0x40] sm:$0xff]
        %v238 = vld [vmem:[%s179 + $0x48] sm:$0xff]
        %v239 = vld [vmem:[%s179 + $0x50] sm:$0xff]
        %v240 = vld [vmem:[%s179 + $0x58] sm:$0xff]
        %v241 = vld [vmem:[%s179 + $0x60] sm:$0xff]
        %v242 = vld [vmem:[%s179 + $0x68] sm:$0xff]
        %v243 = vld [vmem:[%s179 + $0x70] sm:$0xff]
        %v244 = vld [vmem:[%s179 + $0x78] sm:$0xff]
        %v245 = vld [vmem:[%s179 + $0x80] sm:$0xff]
        %v246 = vld [vmem:[%s179 + $0x88] sm:$0xff]
        %v247 = vld [vmem:[%s179 + $0x90] sm:$0xff]
        %v248 = vld [vmem:[%s179 + $0x98] sm:$0xff]
        %v249 = vld [vmem:[%s179 + $0xa0] sm:$0xff]
        %v250 = vld [vmem:[%s179 + $0xa8] sm:$0xff]
        %v251 = vld [vmem:[%s179 + $0xb0] sm:$0xff]
        %v252 = vld [vmem:[%s179 + $0xb8] sm:$0xff]
        %v253 = vld [vmem:[%s179 + $0xc0] sm:$0xff]
        %v254 = vld [vmem:[%s179 + $0xc8] sm:$0xff]
        %v255 = vld [vmem:[%s179 + $0xd0] sm:$0xff]
        %v256 = vld [vmem:[%s179 + $0xd8] sm:$0xff]
        %v257 = vld [vmem:[%s179 + $0xe0] sm:$0xff]
        %v258 = vld [vmem:[%s179 + $0xe8] sm:$0xff]
        %v259 = vld [vmem:[%s179 + $0xf0] sm:$0xff]
        %v260 = vld [vmem:[%s179 + $0xf8] sm:$0xff]
        %v261 = vld [vmem:[%s179 + $0x100] sm:$0xff]
        %v262 = vld [vmem:[%s179 + $0x108] sm:$0xff]
        %v263 = vld [vmem:[%s179 + $0x110] sm:$0xff]
        %v264 = vld [vmem:[%s179 + $0x118] sm:$0xff]
        %v265 = vld [vmem:[%s179 + $0x120] sm:$0xff]
        %v266 = vld [vmem:[%s179 + $0x128] sm:$0xff]
        %v267 = vld [vmem:[%s179 + $0x130] sm:$0xff]
        %v268 = vld [vmem:[%s179 + $0x138] sm:$0xff]
        %v269 = vld [vmem:[%s179 + $0x140] sm:$0xff]
        %v270 = vld [vmem:[%s179 + $0x148] sm:$0xff]
        %v271 = vld [vmem:[%s179 + $0x150] sm:$0xff]
        %v272 = vld [vmem:[%s179 + $0x158] sm:$0xff]
        %v273 = vld [vmem:[%s179 + $0x160] sm:$0xff]
        %v274 = vld [vmem:[%s179 + $0x168] sm:$0xff]
        %v275 = vld [vmem:[%s179 + $0x170] sm:$0xff]
        %v276 = vld [vmem:[%s179 + $0x178] sm:$0xff]
        %v277 = vld [vmem:[%s179 + $0x180] sm:$0xff]
        %v278 = vadd.f32 %v180, %v229
        %v279 = vadd.f32 %v181, %v230
        %v280 = vadd.f32 %v182, %v231
        %v281 = vadd.f32 %v183, %v232
        %v282 = vadd.f32 %v184, %v233
        %v283 = vadd.f32 %v185, %v234
        %v284 = vadd.f32 %v186, %v235
        %v285 = vadd.f32 %v187, %v236
        %v286 = vadd.f32 %v188, %v237
        %v287 = vadd.f32 %v189, %v238
        %v288 = vadd.f32 %v190, %v239
        %v289 = vadd.f32 %v191, %v240
        %v290 = vadd.f32 %v192, %v241
        %v291 = vadd.f32 %v193, %v242
        %v292 = vadd.f32 %v194, %v243
        %v293 = vadd.f32 %v195, %v244
        %v294 = vadd.f32 %v196, %v245
        %v295 = vadd.f32 %v197, %v246
        %v296 = vadd.f32 %v198, %v247
        %v297 = vadd.f32 %v199, %v248
        %v298 = vadd.f32 %v200, %v249
        %v299 = vadd.f32 %v201, %v250
        %v300 = vadd.f32 %v202, %v251
        %v301 = vadd.f32 %v203, %v252
        %v302 = vadd.f32 %v204, %v253
        %v303 = vadd.f32 %v205, %v254
        %v304 = vadd.f32 %v206, %v255
        %v305 = vadd.f32 %v207, %v256
        %v306 = vadd.f32 %v208, %v257
        %v307 = vadd.f32 %v209, %v258
        %v308 = vadd.f32 %v210, %v259
        %v309 = vadd.f32 %v211, %v260
        %v310 = vadd.f32 %v212, %v261
        %v311 = vadd.f32 %v213, %v262
        %v312 = vadd.f32 %v214, %v263
        %v313 = vadd.f32 %v215, %v264
        %v314 = vadd.f32 %v216, %v265
        %v315 = vadd.f32 %v217, %v266
        %v316 = vadd.f32 %v218, %v267
        %v317 = vadd.f32 %v219, %v268
        %v318 = vadd.f32 %v220, %v269
        %v319 = vadd.f32 %v221, %v270
        %v320 = vadd.f32 %v222, %v271
        %v321 = vadd.f32 %v223, %v272
        %v322 = vadd.f32 %v224, %v273
        %v323 = vadd.f32 %v225, %v274
        %v324 = vadd.f32 %v226, %v275
        %v325 = vadd.f32 %v227, %v276
        %v326 = vadd.f32 %v228, %v277
        %327 = vst [vmem:[%s174] sm:$0xff] %v278
        %328 = vst [vmem:[%s174 + $0x8] sm:$0xff] %v279
        %329 = vst [vmem:[%s174 + $0x10] sm:$0xff] %v280
        %330 = vst [vmem:[%s174 + $0x18] sm:$0xff] %v281
        %331 = vst [vmem:[%s174 + $0x20] sm:$0xff] %v282
        %332 = vst [vmem:[%s174 + $0x28] sm:$0xff] %v283
        %333 = vst [vmem:[%s174 + $0x30] sm:$0xff] %v284
        %334 = vst [vmem:[%s174 + $0x38] sm:$0xff] %v285
        %335 = vst [vmem:[%s174 + $0x40] sm:$0xff] %v286
        %336 = vst [vmem:[%s174 + $0x48] sm:$0xff] %v287
        %337 = vst [vmem:[%s174 + $0x50] sm:$0xff] %v288
        %338 = vst [vmem:[%s174 + $0x58] sm:$0xff] %v289
        %339 = vst [vmem:[%s174 + $0x60] sm:$0xff] %v290
        %340 = vst [vmem:[%s174 + $0x68] sm:$0xff] %v291
        %341 = vst [vmem:[%s174 + $0x70] sm:$0xff] %v292
        %342 = vst [vmem:[%s174 + $0x78] sm:$0xff] %v293
        %343 = vst [vmem:[%s174 + $0x80] sm:$0xff] %v294
        %344 = vst [vmem:[%s174 + $0x88] sm:$0xff] %v295
        %345 = vst [vmem:[%s174 + $0x90] sm:$0xff] %v296
        %346 = vst [vmem:[%s174 + $0x98] sm:$0xff] %v297
        %347 = vst [vmem:[%s174 + $0xa0] sm:$0xff] %v298
        %348 = vst [vmem:[%s174 + $0xa8] sm:$0xff] %v299
        %349 = vst [vmem:[%s174 + $0xb0] sm:$0xff] %v300
        %350 = vst [vmem:[%s174 + $0xb8] sm:$0xff] %v301
        %351 = vst [vmem:[%s174 + $0xc0] sm:$0xff] %v302
        %352 = vst [vmem:[%s174 + $0xc8] sm:$0xff] %v303
        %353 = vst [vmem:[%s174 + $0xd0] sm:$0xff] %v304
        %354 = vst [vmem:[%s174 + $0xd8] sm:$0xff] %v305
        %355 = vst [vmem:[%s174 + $0xe0] sm:$0xff] %v306
        %356 = vst [vmem:[%s174 + $0xe8] sm:$0xff] %v307
        %357 = vst [vmem:[%s174 + $0xf0] sm:$0xff] %v308
        %358 = vst [vmem:[%s174 + $0xf8] sm:$0xff] %v309
        %359 = vst [vmem:[%s174 + $0x100] sm:$0xff] %v310
        %360 = vst [vmem:[%s174 + $0x108] sm:$0xff] %v311
        %361 = vst [vmem:[%s174 + $0x110] sm:$0xff] %v312
        %362 = vst [vmem:[%s174 + $0x118] sm:$0xff] %v313
        %363 = vst [vmem:[%s174 + $0x120] sm:$0xff] %v314
        %364 = vst [vmem:[%s174 + $0x128] sm:$0xff] %v315
        %365 = vst [vmem:[%s174 + $0x130] sm:$0xff] %v316
        %366 = vst [vmem:[%s174 + $0x138] sm:$0xff] %v317
        %367 = vst [vmem:[%s174 + $0x140] sm:$0xff] %v318
        %368 = vst [vmem:[%s174 + $0x148] sm:$0xff] %v319
        %369 = vst [vmem:[%s174 + $0x150] sm:$0xff] %v320
        %370 = vst [vmem:[%s174 + $0x158] sm:$0xff] %v321
        %371 = vst [vmem:[%s174 + $0x160] sm:$0xff] %v322
        %372 = vst [vmem:[%s174 + $0x168] sm:$0xff] %v323
        %373 = vst [vmem:[%s174 + $0x170] sm:$0xff] %v324
        %374 = vst [vmem:[%s174 + $0x178] sm:$0xff] %v325
        %375 = vst [vmem:[%s174 + $0x180] sm:$0xff] %v326
        %s376 = sand.u32 %s79, 1
        %s377 = scalar_lea.sflag [#allocation4], %s376
        %s378 = sand.u32 %s79, 1
        %s379 = smul.addr %s378, 392
        %s380 = scalar_lea.vmem [#allocation5], %s379
        // Predicated region
        $region33: #{tpu_custom_call.1} parent=27 // pred_check
          %p381 = pneg %p89
        $region34: #{tpu_custom_call.1} parent=27 // pred_check_branch
          %383 = sbr.rel (%p381) target = $region36
        $region35: #{tpu_custom_call.1} parent=27 // pred_region
          %s385 = ssub.s32 6272, 6272
          %386 = vsyncadd %s377, %s385
          %s387 = smul.addr %s19, 49
          %s388 = smul.addr %s387, 128
          %s389 = scalar_lea.hbm %s2, %s388
          %s391 = sshll.u32 %s380, 4
          %s392 = int_to_ptr.vmem [resolvable:$true] %s391
          %394 = dma.vmem_to_hbm [thread:$0]  %s392, 6272, %s389, %s377
        $region36: #{tpu_custom_call.1} parent=27 // pred_fallthru
          _
      $region28: #{tpu_custom_call.1} parent=5 // pred_fallthru
        _
      %p395 = scmp.le.s32.totalorder 2, %s14
      // Predicated region
      $region37: #{tpu_custom_call.1} parent=5 // pred_check
        %p396 = pneg %p395
      $region38: #{tpu_custom_call.1} parent=5 // pred_check_branch
        %398 = sbr.rel (%p396) target = $region40
      $region39: #{tpu_custom_call.1} parent=5 // pred_region
        %s399 = ssub.s32 %s14, 2
        // Predicated region
        $region41: #{tpu_custom_call.1} parent=39 // pred_check
          %p400 = pneg %p95
        $region42: #{tpu_custom_call.1} parent=39 // pred_check_branch
          %402 = sbr.rel (%p400) target = $region44
        $region43: #{tpu_custom_call.1} parent=39 // pred_region
          %s403 = sand.u32 %s80, 1
          %s404 = scalar_lea.sflag [#allocation4], %s403
          %s405 = sand.u32 %s80, 1
          %s406 = smul.addr %s405, 392
          %s407 = scalar_lea.vmem [#allocation5], %s406
          %408 = dma.done %s404, 6272
        $region44: #{tpu_custom_call.1} parent=39 // pred_fallthru
          _
      $region40: #{tpu_custom_call.1} parent=5 // pred_fallthru
        _
    $region6: #{tpu_custom_call.1} parent=1 // loop_footer
      %s18 = sadd.s32 1, %s14
    $region7: #{tpu_custom_call.1} parent=1 // loop_footer_branch
      %13 = sbr.rel target = $region3
    $region8: #{tpu_custom_call.1} parent=1 // loop_exit
      _
    %409 = vsyncpa [#allocation3], 1
    %s410 = scalar_lea.sflag [#allocation3], 1
    %411 = vsyncpa %s410, 1
    %412 = vsyncpa [#allocation4], 1
    %s413 = scalar_lea.sflag [#allocation4], 1
    %414 = vsyncpa %s413, 1

</llo_original>
